<compile_context>
chip_gen: v5e
topology: v5e:2x2
jax: 0.10.0
libtpu: 0.0.40
codegen_flags: <defaults>
</compile_context>

<pallas_src>
import functools

import jax
import jax.numpy as jnp
from jax import lax
from jax.experimental import pallas as pl
from jax.experimental.pallas import tpu as pltpu

_EPS = 1e-12            # matches torch.nn.functional.normalize default eps
_EPS2 = _EPS * _EPS
_NEG_BIG = -1e30        # finite "-inf" used to mask padded columns


def _round_up(x, m):
    return (x + m - 1) // m * m


def _nt_xent_kernel(q_ref, k_ref, out_ref, qn_scr, m_scr, l_scr, pos_scr, *,
                    inv_t, b_valid, tn, mask_cols):
    """One (row-block i, col-block j) step of the online-logsumexp NT-Xent loss."""
    j = pl.program_id(1)
    nj = pl.num_programs(1)

    # --- once per row block: normalize, fold 1/T, cache; init online stats ---
    @pl.when(j == 0)
    def _():
        q = q_ref[...].astype(jnp.float32)                       # (TM, D)
        ssq = jnp.sum(q * q, axis=1, keepdims=True)              # (TM, 1)
        # F.normalize: x / max(||x||, eps) == x * rsqrt(max(||x||^2, eps^2))
        qn_scr[...] = (q * lax.rsqrt(jnp.maximum(ssq, _EPS2))) * inv_t
        # positive logit sim[i, i] = ||f||^2 / max(||f||, eps)^2 / T
        pos_scr[...] = (ssq / jnp.maximum(ssq, _EPS2)) * inv_t
        m_scr[...] = jnp.full_like(m_scr, -jnp.inf)
        l_scr[...] = jnp.zeros_like(l_scr)

    # --- normalize the streamed col block (each seen once per row block) -----
    k = k_ref[...].astype(jnp.float32)                            # (TN, D)
    ssk = jnp.sum(k * k, axis=1, keepdims=True)
    kn = k * lax.rsqrt(jnp.maximum(ssk, _EPS2))

    # --- (TM, TN) sim block: contraction on last dims, no explicit transpose --
    sim = lax.dot_general(qn_scr[...], kn,
                          dimension_numbers=(((1,), (1,)), ((), ())),
                          preferred_element_type=jnp.float32)

    if mask_cols:
        tm = sim.shape[0]
        col = j * tn + lax.broadcasted_iota(jnp.int32, (tm, tn), 1)
        sim = jnp.where(col < b_valid, sim, _NEG_BIG)

    # --- online logsumexp -----------------------------------------------------
    m_prev = m_scr[...]
    m_new = jnp.maximum(m_prev, jnp.max(sim, axis=1, keepdims=True))
    alpha = jnp.exp(m_prev - m_new)                 # 0 at j == 0 (m_prev = -inf)
    p = jnp.exp(sim - m_new)
    l_scr[...] = alpha * l_scr[...] + jnp.sum(p, axis=1, keepdims=True)
    m_scr[...] = m_new

    # --- epilogue: per-row loss = lse - positive  (log only once per row) -----
    @pl.when(j == nj - 1)
    def _():
        per_row = m_scr[...] + jnp.log(l_scr[...]) - pos_scr[...]   # (TM, 1)
        out_ref[...] = jnp.broadcast_to(per_row, out_ref.shape)     # lane-dense


def contrastive_loss(features, labels=None, temperature=0.07):
    """InfoNCE / NT-Xent forward. `labels` accepted but unused (matches the ref)."""
    del labels  # the reference forward never uses labels
    B, D = features.shape

    # Tile plan: one block for small B; 256x256 sim blocks otherwise.
    if B <= 256:
        tm = tn = _round_up(B, 8)
    else:
        tm = tn = 256
    b_pad = _round_up(B, tm)

    f = features
    if b_pad != B:
        f = jnp.pad(f, ((0, b_pad - B), (0, 0)))

    grid = (b_pad // tm, b_pad // tn)

    kernel = functools.partial(
        _nt_xent_kernel,
        inv_t=float(1.0 / temperature),
        b_valid=B,
        tn=tn,
        mask_cols=(b_pad != B),
    )

    cost = pl.CostEstimate(
        flops=2 * b_pad * b_pad * D,
        transcendentals=b_pad * b_pad,
        bytes_accessed=2 * b_pad * D * 4 + b_pad * 128 * 4,
    )

    out = pl.pallas_call(
        kernel,
        out_shape=jax.ShapeDtypeStruct((b_pad, 128), jnp.float32),
        grid_spec=pltpu.PrefetchScalarGridSpec(
            num_scalar_prefetch=0,
            grid=grid,
            in_specs=[
                pl.BlockSpec((tm, D), lambda i, j: (i, 0)),  # row block (held over j)
                pl.BlockSpec((tn, D), lambda i, j: (j, 0)),  # col block (streamed)
            ],
            out_specs=pl.BlockSpec((tm, 128), lambda i, j: (i, 0)),
            scratch_shapes=[
                pltpu.VMEM((tm, D), jnp.float32),   # cached normalized/scaled rows
                pltpu.VMEM((tm, 1), jnp.float32),   # running max m_i
                pltpu.VMEM((tm, 1), jnp.float32),   # running sum l_i
                pltpu.VMEM((tm, 1), jnp.float32),   # positive logit per row
            ],
        ),
        compiler_params=pltpu.CompilerParams(
            dimension_semantics=("parallel", "arbitrary")),
        cost_estimate=cost,
    )(f, f)

    return jnp.mean(out[:B, 0])


def _reference_loss(features, temperature=0.07):
    f = features.astype(jnp.float32)
    fn = f / jnp.maximum(jnp.linalg.norm(f, axis=1, keepdims=True), _EPS)
    sim = (fn @ fn.T) / temperature
    lse = jax.scipy.special.logsumexp(sim, axis=1)
    return jnp.mean(lse - jnp.diag(sim))


if __name__ == "__main__":
    key = jax.random.PRNGKey(0)
    k1, k2, k3, k4 = jax.random.split(key, 4)

    # Small shapes consistent with the module's (B, D) + (B,) contract.
    B, D = 8, 32
    features = jax.random.normal(k1, (B, D), dtype=jnp.float32)
    labels = jax.random.randint(k2, (B,), 0, 4)     # unused by the forward

    loss = contrastive_loss(features, labels)
    jax.block_until_ready(loss)
    ref = _reference_loss(features)
    assert jnp.allclose(loss, ref, rtol=1e-4, atol=1e-4), (loss, ref)

    # Tiled + padded + masked multi-block path.
    B2, D2 = 384, 64
    features2 = jax.random.normal(k3, (B2, D2), dtype=jnp.float32)
    loss2 = contrastive_loss(features2)
    jax.block_until_ready(loss2)
    ref2 = _reference_loss(features2)
    assert jnp.allclose(loss2, ref2, rtol=1e-4, atol=1e-4), (loss2, ref2)

    # Tiled multi-block path with no padding (mask_cols=False).
    B3, D3 = 512, 128
    features3 = jax.random.normal(k4, (B3, D3), dtype=jnp.float32)
    loss3 = contrastive_loss(features3)
    jax.block_until_ready(loss3)
    ref3 = _reference_loss(features3)
    assert jnp.allclose(loss3, ref3, rtol=1e-4, atol=1e-4), (loss3, ref3)

    print("KERNEL_OK")
</pallas_src>

<mosaic_0001>
module attributes {stable_mosaic.version = 11 : i64} {
  func.func @_nt_xent_kernel(%arg0: i32, %arg1: i32, %arg2: memref<8x32xf32, #tpu.memory_space<vmem>>, %arg3: memref<8x32xf32, #tpu.memory_space<vmem>>, %arg4: memref<8x128xf32, #tpu.memory_space<vmem>>, %arg5: memref<8x32xf32, #tpu.memory_space<vmem>>, %arg6: memref<8x1xf32, #tpu.memory_space<vmem>>, %arg7: memref<8x1xf32, #tpu.memory_space<vmem>>, %arg8: memref<8x1xf32, #tpu.memory_space<vmem>>) attributes {dimension_semantics = [#tpu.dimension_semantics<parallel>, #tpu.dimension_semantics<arbitrary>], iteration_bounds = array<i64: 1, 1>, scalar_prefetch = 0 : i64, scratch_operands = 4 : i64, tpu.core_type = #tpu.core_type<tc>, window_params = [{transform_indices = @transform_0, window_bounds = array<i64: 8, 32>}, {transform_indices = @transform_1, window_bounds = array<i64: 8, 32>}, {transform_indices = @transform_2, window_bounds = array<i64: 8, 128>}]} {
    %c0_i32 = arith.constant 0 : i32
    %0 = arith.cmpi eq, %arg1, %c0_i32 : i32
    %1 = arith.extui %0 : i1 to i32
    %c0_i32_0 = arith.constant 0 : i32
    %2 = arith.cmpi ne, %1, %c0_i32_0 : i32
    scf.if %2 {
      %c0_18 = arith.constant 0 : index
      %c0_19 = arith.constant 0 : index
      %33 = vector.load %arg2[%c0_18, %c0_19] : memref<8x32xf32, #tpu.memory_space<vmem>>, vector<8x32xf32>
      %34 = arith.mulf %33, %33 : vector<8x32xf32>
      %cst_20 = arith.constant dense<0.000000e+00> : vector<8xf32>
      %35 = vector.multi_reduction <add>, %34, %cst_20 [1] : vector<8x32xf32> to vector<8xf32>
      %36 = vector.shape_cast %35 : vector<8xf32> to vector<8x1xf32>
      %cst_21 = arith.constant 1.000000e-24 : f32
      %37 = vector.broadcast %cst_21 : f32 to vector<8x1xf32>
      %38 = arith.maximumf %36, %37 : vector<8x1xf32>
      %39 = math.rsqrt %38 : vector<8x1xf32>
      %40 = vector.broadcast %39 : vector<8x1xf32> to vector<8x32xf32>
      %41 = arith.mulf %33, %40 : vector<8x32xf32>
      %cst_22 = arith.constant 14.2857141 : f32
      %42 = vector.broadcast %cst_22 : f32 to vector<8x32xf32>
      %43 = arith.mulf %41, %42 : vector<8x32xf32>
      %c0_23 = arith.constant 0 : index
      %c0_24 = arith.constant 0 : index
      %44 = vector.load %arg5[%c0_23, %c0_24] : memref<8x32xf32, #tpu.memory_space<vmem>>, vector<8x32xf32>
      tpu.vector_store %arg5[%c0_23, %c0_24], %43 {strides = array<i32>} : memref<8x32xf32, #tpu.memory_space<vmem>>, vector<8x32xf32>,
      %cst_25 = arith.constant 1.000000e-24 : f32
      %45 = vector.broadcast %cst_25 : f32 to vector<8x1xf32>
      %46 = arith.maximumf %36, %45 : vector<8x1xf32>
      %47 = arith.divf %36, %46 : vector<8x1xf32>
      %cst_26 = arith.constant 14.2857141 : f32
      %48 = vector.broadcast %cst_26 : f32 to vector<8x1xf32>
      %49 = arith.mulf %47, %48 : vector<8x1xf32>
      %c0_27 = arith.constant 0 : index
      %c0_28 = arith.constant 0 : index
      %50 = vector.load %arg8[%c0_27, %c0_28] : memref<8x1xf32, #tpu.memory_space<vmem>>, vector<8x1xf32>
      tpu.vector_store %arg8[%c0_27, %c0_28], %49 {strides = array<i32>} : memref<8x1xf32, #tpu.memory_space<vmem>>, vector<8x1xf32>,
      %cst_29 = arith.constant 0xFF800000 : f32
      %51 = vector.broadcast %cst_29 : f32 to vector<8x1xf32>
      %c0_30 = arith.constant 0 : index
      %c0_31 = arith.constant 0 : index
      %52 = vector.load %arg6[%c0_30, %c0_31] : memref<8x1xf32, #tpu.memory_space<vmem>>, vector<8x1xf32>
      tpu.vector_store %arg6[%c0_30, %c0_31], %51 {strides = array<i32>} : memref<8x1xf32, #tpu.memory_space<vmem>>, vector<8x1xf32>,
      %cst_32 = arith.constant 0.000000e+00 : f32
      %53 = vector.broadcast %cst_32 : f32 to vector<8x1xf32>
      %c0_33 = arith.constant 0 : index
      %c0_34 = arith.constant 0 : index
      %54 = vector.load %arg7[%c0_33, %c0_34] : memref<8x1xf32, #tpu.memory_space<vmem>>, vector<8x1xf32>
      tpu.vector_store %arg7[%c0_33, %c0_34], %53 {strides = array<i32>} : memref<8x1xf32, #tpu.memory_space<vmem>>, vector<8x1xf32>,
    } else {
    }
    %c0 = arith.constant 0 : index
    %c0_1 = arith.constant 0 : index
    %3 = vector.load %arg3[%c0, %c0_1] : memref<8x32xf32, #tpu.memory_space<vmem>>, vector<8x32xf32>
    %4 = arith.mulf %3, %3 : vector<8x32xf32>
    %cst = arith.constant dense<0.000000e+00> : vector<8xf32>
    %5 = vector.multi_reduction <add>, %4, %cst [1] : vector<8x32xf32> to vector<8xf32>
    %6 = vector.shape_cast %5 : vector<8xf32> to vector<8x1xf32>
    %cst_2 = arith.constant 1.000000e-24 : f32
    %7 = vector.broadcast %cst_2 : f32 to vector<8x1xf32>
    %8 = arith.maximumf %6, %7 : vector<8x1xf32>
    %9 = math.rsqrt %8 : vector<8x1xf32>
    %10 = vector.broadcast %9 : vector<8x1xf32> to vector<8x32xf32>
    %11 = arith.mulf %3, %10 : vector<8x32xf32>
    %c0_3 = arith.constant 0 : index
    %c0_4 = arith.constant 0 : index
    %12 = vector.load %arg5[%c0_3, %c0_4] : memref<8x32xf32, #tpu.memory_space<vmem>>, vector<8x32xf32>
    %cst_5 = arith.constant dense<0.000000e+00> : vector<8x8xf32>
    %13 = tpu.matmul %12, %11, %cst_5 {dimension_numbers = #tpu.dot_dimension_numbers<[1], [1], [0], [0], [0, 0, 1, 0], [], []>} : vector<8x32xf32>, vector<8x32xf32>, vector<8x8xf32> -> vector<8x8xf32>
    %c0_6 = arith.constant 0 : index
    %c0_7 = arith.constant 0 : index
    %14 = vector.load %arg6[%c0_6, %c0_7] : memref<8x1xf32, #tpu.memory_space<vmem>>, vector<8x1xf32>
    %cst_8 = arith.constant dense<0xFF800000> : vector<8xf32>
    %15 = vector.multi_reduction <maximumf>, %13, %cst_8 [1] : vector<8x8xf32> to vector<8xf32>
    %16 = vector.shape_cast %15 : vector<8xf32> to vector<8x1xf32>
    %17 = arith.maximumf %14, %16 : vector<8x1xf32>
    %18 = arith.subf %14, %17 : vector<8x1xf32>
    %19 = math.exp %18 : vector<8x1xf32>
    %20 = vector.broadcast %17 : vector<8x1xf32> to vector<8x8xf32>
    %21 = arith.subf %13, %20 : vector<8x8xf32>
    %22 = math.exp %21 : vector<8x8xf32>
    %c0_9 = arith.constant 0 : index
    %c0_10 = arith.constant 0 : index
    %23 = vector.load %arg7[%c0_9, %c0_10] : memref<8x1xf32, #tpu.memory_space<vmem>>, vector<8x1xf32>
    %24 = arith.mulf %19, %23 : vector<8x1xf32>
    %cst_11 = arith.constant dense<0.000000e+00> : vector<8xf32>
    %25 = vector.multi_reduction <add>, %22, %cst_11 [1] : vector<8x8xf32> to vector<8xf32>
    %26 = vector.shape_cast %25 : vector<8xf32> to vector<8x1xf32>
    %27 = arith.addf %24, %26 : vector<8x1xf32>
    %c0_12 = arith.constant 0 : index
    %c0_13 = arith.constant 0 : index
    %28 = vector.load %arg7[%c0_12, %c0_13] : memref<8x1xf32, #tpu.memory_space<vmem>>, vector<8x1xf32>
    tpu.vector_store %arg7[%c0_12, %c0_13], %27 {strides = array<i32>} : memref<8x1xf32, #tpu.memory_space<vmem>>, vector<8x1xf32>,
    %c0_14 = arith.constant 0 : index
    %c0_15 = arith.constant 0 : index
    %29 = vector.load %arg6[%c0_14, %c0_15] : memref<8x1xf32, #tpu.memory_space<vmem>>, vector<8x1xf32>
    tpu.vector_store %arg6[%c0_14, %c0_15], %17 {strides = array<i32>} : memref<8x1xf32, #tpu.memory_space<vmem>>, vector<8x1xf32>,
    %c0_i32_16 = arith.constant 0 : i32
    %30 = arith.cmpi eq, %arg1, %c0_i32_16 : i32
    %31 = arith.extui %30 : i1 to i32
    %c0_i32_17 = arith.constant 0 : i32
    %32 = arith.cmpi ne, %31, %c0_i32_17 : i32
    scf.if %32 {
      %c0_18 = arith.constant 0 : index
      %c0_19 = arith.constant 0 : index
      %33 = vector.load %arg6[%c0_18, %c0_19] : memref<8x1xf32, #tpu.memory_space<vmem>>, vector<8x1xf32>
      %c0_20 = arith.constant 0 : index
      %c0_21 = arith.constant 0 : index
      %34 = vector.load %arg7[%c0_20, %c0_21] : memref<8x1xf32, #tpu.memory_space<vmem>>, vector<8x1xf32>
      %35 = math.log %34 : vector<8x1xf32>
      %36 = arith.addf %33, %35 : vector<8x1xf32>
      %c0_22 = arith.constant 0 : index
      %c0_23 = arith.constant 0 : index
      %37 = vector.load %arg8[%c0_22, %c0_23] : memref<8x1xf32, #tpu.memory_space<vmem>>, vector<8x1xf32>
      %38 = arith.subf %36, %37 : vector<8x1xf32>
      %39 = vector.shape_cast %38 : vector<8x1xf32> to vector<8x1xf32>
      %40 = vector.broadcast %39 : vector<8x1xf32> to vector<8x128xf32>
      %c0_24 = arith.constant 0 : index
      %c0_25 = arith.constant 0 : index
      %41 = vector.load %arg4[%c0_24, %c0_25] : memref<8x128xf32, #tpu.memory_space<vmem>>, vector<8x128xf32>
      tpu.vector_store %arg4[%c0_24, %c0_25], %40 {strides = array<i32>} : memref<8x128xf32, #tpu.memory_space<vmem>>, vector<8x128xf32>,
    } else {
    }
    return
  }
  func.func @transform_0(%arg0: i32, %arg1: i32) -> (i32, i32) {
    %c0_i32 = arith.constant 0 : i32
    %c0_i32_0 = arith.constant 0 : i32
    return %arg0, %c0_i32 : i32, i32
  }
  func.func @transform_1(%arg0: i32, %arg1: i32) -> (i32, i32) {
    %c0_i32 = arith.constant 0 : i32
    %c0_i32_0 = arith.constant 0 : i32
    return %arg1, %c0_i32 : i32, i32
  }
  func.func @transform_2(%arg0: i32, %arg1: i32) -> (i32, i32) {
    %c0_i32 = arith.constant 0 : i32
    %c0_i32_0 = arith.constant 0 : i32
    return %arg0, %c0_i32 : i32, i32
  }
}

</mosaic_0001>

<llo_original>
// kernel: tpu_custom_call.1
$region0: #{tpu_custom_call.1}
  #allocation0 [shape = 'u32[]', space=smem, size = 0x4, offset = 0x4, fixed_abs, tag = 'smem constant byte address 0x4 - core index']
  #allocation1 [shape = 'u32[72,128]{1,0:T(1,128)}', space=vmem, size = 0x9000, scoped, tag = 'internal scratch']
  #allocation2 [shape = 'f32[8,32]{1,0:T(8,128)}', space=vmem, size = 0x1000, scoped, tag = 'scratch operand']
  #allocation3 [shape = 'f32[8,1]{1,0:T(8,128)}', space=vmem, size = 0x1000, scoped, tag = 'scratch operand']
  #allocation4 [shape = 'f32[8,1]{1,0:T(8,128)}', space=vmem, size = 0x1000, scoped, tag = 'scratch operand']
  #allocation5 [shape = 'f32[8,1]{1,0:T(8,128)}', space=vmem, size = 0x1000, scoped, tag = 'scratch operand']
  %s0 = inlined_call_operand.hbm [shape: f32[8,32], index: 0, kind: input, shape index: {}]
  %s1 = inlined_call_operand.hbm [shape: f32[8,32], index: 1, kind: input, shape index: {}]
  %s2 = inlined_call_operand.hbm [shape: f32[8,128], index: 2, kind: output, shape index: {}]
  %s3 = sld [smem:[#allocation0]]
  $region34: #{tpu_custom_call.1} parent=0
    _
  %s5 = ssub.s32 1, %s3
  %s6 = scalar_select 0, %s5, %s3
  $region1: #{tpu_custom_call.1} parent=0
    #allocation6 [shape = 'u8[4096]{0}', space=vmem, size = 0x1000, scoped, tag = 'input window, operand 0, single buffered']
    #allocation7 [shape = 's32[1]{0}', space=sflag, size = 0x4, scoped, tag = 'scoped memory for tpu_custom_call.1']
    #allocation8 [shape = 's32[1]{0}', space=sflag, size = 0x4, scoped, tag = 'scoped memory for tpu_custom_call.1']
    #allocation9 [shape = 'u8[4096]{0}', space=vmem, size = 0x1000, scoped, tag = 'input window, operand 1, single buffered']
    #allocation10 [shape = 's32[1]{0}', space=sflag, size = 0x4, scoped, tag = 'scoped memory for tpu_custom_call.1']
    #allocation11 [shape = 'u8[4096]{0}', space=vmem, size = 0x1000, scoped, tag = 'output window, operand 0, single buffered']
    %7 = vsyncpa [#allocation7], 0
    %8 = vsyncpa [#allocation10], 0
    %9 = vsyncpa [#allocation8], 0
    // Predicated region
    $region2: #{tpu_custom_call.1} parent=1 // pred_check
      _
    $region3: #{tpu_custom_call.1} parent=1 // pred_check_branch
      %11 = sbr.rel (0) target = $region5
    $region4: #{tpu_custom_call.1} parent=1 // pred_region
      %13 = vsyncadd [#allocation7], 0
      %s15 = sshll.u32 %s0, 4
      %s16 = int_to_ptr.hbm [resolvable:$true] %s15
      %s17 = sshll.u32 [#allocation6], 4
      %s18 = int_to_ptr.vmem [resolvable:$true] %s17
      %20 = dma.hbm_to_vmem [thread:$0]  %s16, 128, %s18, [#allocation7]
    $region5: #{tpu_custom_call.1} parent=1 // pred_fallthru
      _
    // Predicated region
    $region6: #{tpu_custom_call.1} parent=1 // pred_check
      _
    $region7: #{tpu_custom_call.1} parent=1 // pred_check_branch
      %22 = sbr.rel (0) target = $region9
    $region8: #{tpu_custom_call.1} parent=1 // pred_region
      %24 = vsyncadd [#allocation10], 0
      %s26 = sshll.u32 %s1, 4
      %s27 = int_to_ptr.hbm [resolvable:$true] %s26
      %s28 = sshll.u32 [#allocation9], 4
      %s29 = int_to_ptr.vmem [resolvable:$true] %s28
      %31 = dma.hbm_to_vmem [thread:$0]  %s27, 128, %s29, [#allocation10]
    $region9: #{tpu_custom_call.1} parent=1 // pred_fallthru
      _
    // Predicated region
    $region10: #{tpu_custom_call.1} parent=1 // pred_check
      _
    $region11: #{tpu_custom_call.1} parent=1 // pred_check_branch
      %33 = sbr.rel (0) target = $region13
    $region12: #{tpu_custom_call.1} parent=1 // pred_region
      %35 = dma.done [#allocation7], 128
    $region13: #{tpu_custom_call.1} parent=1 // pred_fallthru
      _
    // Predicated region
    $region14: #{tpu_custom_call.1} parent=1 // pred_check
      _
    $region15: #{tpu_custom_call.1} parent=1 // pred_check_branch
      %37 = sbr.rel (0) target = $region17
    $region16: #{tpu_custom_call.1} parent=1 // pred_region
      %39 = dma.done [#allocation10], 128
    $region17: #{tpu_custom_call.1} parent=1 // pred_fallthru
      _
    %p40 = scmp.eq.s32.totalorder 0, 0
    // Predicated region
    $region18: #{tpu_custom_call.1} parent=1 // pred_check
      %p41 = pneg %p40
    $region19: #{tpu_custom_call.1} parent=1 // pred_check_branch
      %43 = sbr.rel (%p41) target = $region21
    $region20: #{tpu_custom_call.1} parent=1 // pred_region
      %v44 = vld [vmem:[#allocation6] sm:$0xff]
      %v45 = vmul.f32 %v44, %v44
      %vm46 = vcmask 261120
      %v47 = vsel %vm46, %v45, 0.0
      %48 = vadd.xlane.f32.xlu0 %v47
      %v49 = vpop.xlane.xlu0 %48
      %v50 = vmax.f32 %v49, 1e-24
      %v51 = vrsqrt.pop %v50
      %v52 = vmul.f32 %v51, %v50
      %v53 = vmul.f32 %v52, %v51
      %v54 = vmul.f32 0.5, %v53
      %v55 = vsub.f32 1.5, %v54
      %v56 = vmul.f32 %v51, %v55
      %vm57 = vweird.f32 %v50
      %vm58 = vweird.f32 %v51
      %vm59 = vmor %vm57, %vm58
      %v60 = vsel %vm59, %v51, %v56
      %v61 = vmul.f32 %v44, %v60
      %v62 = vmul.f32 %v61, 14.285714
      %63 = vst.msk [vmem:[#allocation2] sm:$0xff] %vm46, %v62
      %v64 = vrcp.pop %v50
      %v65 = vmul.f32 %v50, %v64
      %v66 = vsub.f32 1.0, %v65
      %v67 = vmul.f32 %v64, %v66
      %v68 = vadd.f32 %v64, %v67
      %vm69 = vweird.f32 %v50
      %vm70 = vweird.f32 %v64
      %vm71 = vmor %vm69, %vm70
      %v72 = vsel %vm71, %v64, %v68
      %v73 = vand.u32 2147483647, %v50
      %vm74 = vcmp.eq.f32.partialorder %v73, 8.507059e+37
      %v75 = vand.u32 %v50, 2147483648
      %v76 = vor.u32 1.1754944e-38, %v75
      %v77 = vsel %vm74, %v76, %v72
      %v78 = vmul.f32 %v49, %v77
      %v79 = vmul.f32 %v78, 14.285714
      %vm80 = vcmask 7168
      %81 = vst.msk [vmem:[#allocation5] sm:$0xff] %vm80, %v79
      %82 = vst.msk [vmem:[#allocation3] sm:$0xff] %vm80, -inf
      %83 = vst.msk [vmem:[#allocation4] sm:$0xff] %vm80, 0.0
    $region21: #{tpu_custom_call.1} parent=1 // pred_fallthru
      _
    %v84 = vld [vmem:[#allocation9] sm:$0xff]
    %v85 = vmul.f32 %v84, %v84
    %vm86 = vcmask 261120
    %v87 = vsel %vm86, %v85, 0.0
    %88 = vadd.xlane.f32.xlu0 %v87
    %v89 = vpop.xlane.xlu0 %88
    %v90 = vmax.f32 %v89, 1e-24
    %v91 = vrsqrt.pop %v90
    %v92 = vmul.f32 %v91, %v90
    %v93 = vmul.f32 %v92, %v91
    %v94 = vmul.f32 0.5, %v93
    %v95 = vsub.f32 1.5, %v94
    %v96 = vmul.f32 %v91, %v95
    %vm97 = vweird.f32 %v90
    %vm98 = vweird.f32 %v91
    %vm99 = vmor %vm97, %vm98
    %v100 = vsel %vm99, %v91, %v96
    %v101 = vmul.f32 %v84, %v100
    %v102 = vld [vmem:[#allocation2] sm:$0xff]
    %v104 = vsel %vm86, %v102, 0
    %v107 = vsel %vm86, %v101, 0
    %109 = vmatpush.xpose.msra.mxu0 0.0
    %110 = vmatpush.xpose.msra.mxu0 0.0
    %111 = vmatpush.xpose.msra.mxu0 0.0
    %112 = vmatpush.xpose.msra.mxu0 0.0
    %113 = vmatpush.xpose.msra.mxu0 0.0
    %114 = vmatpush.xpose.msra.mxu0 0.0
    %115 = vmatpush.xpose.msra.mxu0 0.0
    %116 = vmatpush.xpose.msra.mxu0 0.0
    %117 = vmatpush.xpose.msra.mxu0 0.0
    %118 = vmatpush.xpose.msra.mxu0 0.0
    %119 = vmatpush.xpose.msra.mxu0 0.0
    %120 = vmatpush.xpose.msra.mxu0 0.0
    %121 = vmatpush.xpose.msra.mxu0 0.0
    %122 = vmatpush.xpose.msra.mxu0 0.0
    %123 = vmatpush.xpose.msra.mxu0 0.0
    %124 = vmatpush.xpose.msra.mxu0 %v107
    %125 = vmatmul.f32.gmra.mxu0 %v104
    %v126 = vpop.f32.mrf.mxu0
    %v127 = vadd.f32 0.0, %v126
    %128 = vdwg.mxu0
    %v129 = vld [vmem:[#allocation3] sm:$0xff]
    %vm130 = vcmask 64512
    %v131 = vsel %vm130, %v127, -inf
    %132 = vmax.xlane.f32.xlu0 %v131
    %v133 = vpop.xlane.xlu0 %132
    %v134 = vmax.f32 %v129, %v133
    %v135 = vsub.f32 %v129, %v134
    %v136 = vmul.f32 %v135, 1.442695
    %v137 = vpow.pop %v136
    %139 = vset.pattern.permute.xlu0 0
    %140 = vperm.xlu0 %139, %v134
    %v141 = vpop.permute.xlu0 %140
    %v143 = vsub.f32 %v127, %v141
    %v144 = vmul.f32 %v143, 1.442695
    %v145 = vpow.pop %v144
    %v146 = vld [vmem:[#allocation4] sm:$0xff]
    %v147 = vmul.f32 %v137, %v146
    %v148 = vsel %vm130, %v145, 0.0
    %149 = vadd.xlane.f32.xlu0 %v148
    %v150 = vpop.xlane.xlu0 %149
    %v151 = vadd.f32 %v147, %v150
    %vm152 = vcmask 7168
    %153 = vst.msk [vmem:[#allocation4] sm:$0xff] %vm152, %v151
    %154 = vst.msk [vmem:[#allocation3] sm:$0xff] %vm152, %v134
    // Predicated region
    $region22: #{tpu_custom_call.1} parent=1 // pred_check
      %p155 = pneg %p40
    $region23: #{tpu_custom_call.1} parent=1 // pred_check_branch
      %157 = sbr.rel (%p155) target = $region25
    $region24: #{tpu_custom_call.1} parent=1 // pred_region
      %v158 = vld [vmem:[#allocation3] sm:$0xff]
      %v159 = vld [vmem:[#allocation4] sm:$0xff]
      %v160 = vlog2.pop %v159
      %v161 = vmul.f32 %v160, 0.6931472
      %v162 = vadd.f32 %v158, %v161
      %v163 = vld [vmem:[#allocation5] sm:$0xff]
      %v164 = vsub.f32 %v162, %v163
      %166 = vset.pattern.permute.xlu0 0
      %167 = vperm.xlu0 %166, %v164
      %v168 = vpop.permute.xlu0 %167
      %170 = vst [vmem:[#allocation11] sm:$0xff] %v168
    $region25: #{tpu_custom_call.1} parent=1 // pred_fallthru
      _
    // Predicated region
    $region26: #{tpu_custom_call.1} parent=1 // pred_check
      _
    $region27: #{tpu_custom_call.1} parent=1 // pred_check_branch
      %172 = sbr.rel (0) target = $region29
    $region28: #{tpu_custom_call.1} parent=1 // pred_region
      %174 = vsyncadd [#allocation8], 0
      %s176 = sshll.u32 [#allocation11], 4
      %s177 = int_to_ptr.vmem [resolvable:$true] %s176
      %s178 = sshll.u32 %s2, 4
      %s179 = int_to_ptr.hbm [resolvable:$true] %s178
      %181 = dma.vmem_to_hbm [thread:$0]  %s177, 128, %s179, [#allocation8]
    $region29: #{tpu_custom_call.1} parent=1 // pred_fallthru
      _
    // Predicated region
    $region30: #{tpu_custom_call.1} parent=1 // pred_check
      _
    $region31: #{tpu_custom_call.1} parent=1 // pred_check_branch
      %183 = sbr.rel (0) target = $region33
    $region32: #{tpu_custom_call.1} parent=1 // pred_region
      %185 = dma.done [#allocation8], 128
    $region33: #{tpu_custom_call.1} parent=1 // pred_fallthru
      _
    %186 = vsyncpa [#allocation7], 1
    %187 = vsyncpa [#allocation10], 1
    %188 = vsyncpa [#allocation8], 1

</llo_original>
